<compile_context>
chip_gen: v7x
topology: tpu7x:2x2x1
jax: 0.10.0
libtpu: 0.0.40
codegen_flags: <defaults>
</compile_context>

<pallas_src>
import functools

import jax
import jax.numpy as jnp
from jax.experimental import pallas as pl
from jax.experimental.pallas import tpu as pltpu


def _round_up(x, m):
    return (x + m - 1) // m * m


def _textcnn_kernel(*refs, T_pad, Kmax, E, TB, use_bn, compute_dtype):
    """Fused conv1d(all filter sizes) + ReLU + masked max/min/sum/sumsq.

    Refs (use_bn=True):  x, w, tvalid | mx, mn, rsum, rsq | xcol
    Refs (use_bn=False): x, w, bias, tvalid | mx | xcol
      x:      (TB, L_x, E)        compute_dtype   zero-padded batch tile
      w:      (Kmax*E, FC)        compute_dtype   packed, K-padded weights
      bias:   (1, FC)             f32             conv bias (no-BN path only)
      tvalid: (1, FC)             i32             valid output length / channel
      mx/mn:  (TB, FC)            f32             per-row masked max / min
      rsum/rsq:(TB, FC)           f32             per-row masked sum / sum-sq
      xcol:   (TB, T_pad, Kmax*E) compute_dtype   im2col scratch
    """
    if use_bn:
        (x_ref, w_ref, tvalid_ref,
         mx_ref, mn_ref, rsum_ref, rsq_ref, xcol_ref) = refs
        bias_ref = None
    else:
        x_ref, w_ref, bias_ref, tvalid_ref, mx_ref, xcol_ref = refs
        mn_ref = rsum_ref = rsq_ref = None

    FC = w_ref.shape[1]
    KE = Kmax * E

    # im2col: Kmax shifted full-slab stores into one lane-contiguous LHS.
    for k in range(Kmax):  # Kmax is small & static
        xcol_ref[:, :, k * E:(k + 1) * E] = (
            x_ref[:, k:k + T_pad, :].astype(compute_dtype))

    # Conv for every row / tap / branch in ONE large MXU matmul.
    lhs = xcol_ref[...].reshape(TB * T_pad, KE)
    acc = jnp.dot(lhs, w_ref[...], preferred_element_type=jnp.float32)
    acc = acc.reshape(TB, T_pad, FC)

    if not use_bn:
        acc = acc + bias_ref[...].reshape(1, 1, FC)
    acc = jnp.maximum(acc, 0.0)  # ReLU

    # Branch-dependent validity: position t is valid iff t < L - K_g + 1.
    t_idx = jax.lax.broadcasted_iota(jnp.int32, (TB, T_pad, FC), 1)
    valid = t_idx < tvalid_ref[...].reshape(1, 1, FC)

    mx_ref[...] = jnp.max(jnp.where(valid, acc, -jnp.inf), axis=1)
    if use_bn:
        mn_ref[...] = jnp.min(jnp.where(valid, acc, jnp.inf), axis=1)
        am = jnp.where(valid, acc, 0.0)
        rsum_ref[...] = jnp.sum(am, axis=1)
        rsq_ref[...] = jnp.sum(am * acc, axis=1)


def _pack_params(params, L, T, F_pad, Kmax, compute_dtype):
    """Pack per-branch (w, gamma, beta, bias) into one lane-dense set."""
    w_cols, g_cols, b_cols, bias_cols, tv_cols = [], [], [], [], []
    for (w, gamma, beta, bias) in params:
        K, _, F = w.shape
        w_cols.append(jnp.pad(w.astype(jnp.float32),
                              ((0, Kmax - K), (0, 0), (0, 0))))
        g_cols.append(gamma.reshape(-1).astype(jnp.float32))
        b_cols.append(beta.reshape(-1).astype(jnp.float32))
        bias_cols.append(bias.reshape(-1).astype(jnp.float32))
        tv_cols.append(jnp.full((F,), L - K + 1, jnp.int32))
    w_packed = jnp.concatenate(w_cols, axis=2)           # (Kmax, E, F_total)
    Km, E, F_total = w_packed.shape
    padc = F_pad - F_total
    w_packed = jnp.pad(w_packed, ((0, 0), (0, 0), (0, padc)))
    w2 = w_packed.reshape(Km * E, F_pad).astype(compute_dtype)
    gamma_v = jnp.concatenate(g_cols)                     # (F_total,)
    beta_v = jnp.concatenate(b_cols)
    bias_p = jnp.pad(jnp.concatenate(bias_cols), (0, padc)).reshape(1, F_pad)
    tvalid_v = jnp.concatenate(tv_cols)                   # (F_total,) int32
    tvalid_p = jnp.pad(tvalid_v, (0, padc),
                       constant_values=T).reshape(1, F_pad)
    return w2, bias_p, tvalid_p, gamma_v, beta_v, tvalid_v, F_total


def textcnn_forward(x, params, *, use_bn=True, eps=1e-5, batch_tile=None,
                    compute_dtype=jnp.bfloat16):
    """Full TextCNN forward: fused Pallas conv/pool kernel + tiny XLA finalize."""
    B, L, E = x.shape
    ks = [p[0].shape[0] for p in params]
    F = params[0][0].shape[2]
    F_total = F * len(params)
    Kmax, Kmin = max(ks), min(ks)
    assert L >= Kmax, "sequence length must be >= largest filter size"

    T = L - Kmin + 1                       # longest valid output length
    T_pad = _round_up(T, 8)                # sublane-dense time tile
    L_x = T_pad + Kmax - 1                 # padded so every tap stays in-bounds
    KE = Kmax * E
    # Lane-dense channel chunks: 128 wide when one chunk suffices, else 256
    # (full v6e/v7x MXU column width) -- chunk axis is megacore-parallel.
    FC = 128 if F_total <= 128 else 256
    F_pad = _round_up(F_total, FC)
    n_fchunks = F_pad // FC

    dsize = jnp.dtype(compute_dtype).itemsize
    # Batch tile: multiple of 8, sized so the per-tile working set
    # (double-buffered x + im2col scratch + f32 activations) is a few MiB.
    per_row = (L_x * E * dsize * 2          # x, double-buffered
               + T_pad * KE * dsize         # im2col scratch
               + 2 * 4 * T_pad * FC)        # f32 activation temporaries
    if batch_tile is None:
        batch_tile = (4 * 2**20) // max(per_row, 1)
    TB = max(8, min(_round_up(B, 8), (int(batch_tile) // 8) * 8))
    B_pad = _round_up(B, TB)
    n_btiles = B_pad // TB

    x_pad = jnp.pad(x.astype(jnp.float32),
                    ((0, B_pad - B), (0, L_x - L), (0, 0))).astype(compute_dtype)
    w2, bias_p, tvalid_p, gamma_v, beta_v, tvalid_v, _ = _pack_params(
        params, L, T, F_pad, Kmax, compute_dtype)

    kernel = functools.partial(
        _textcnn_kernel, T_pad=T_pad, Kmax=Kmax, E=E, TB=TB,
        use_bn=use_bn, compute_dtype=compute_dtype)

    x_spec = pl.BlockSpec((TB, L_x, E), lambda i, j: (i, 0, 0))
    w_spec = pl.BlockSpec((KE, FC), lambda i, j: (0, j))
    vec_spec = pl.BlockSpec((1, FC), lambda i, j: (0, j))
    out_spec = pl.BlockSpec((TB, FC), lambda i, j: (i, j))
    out_sds = jax.ShapeDtypeStruct((B_pad, F_pad), jnp.float32)

    if use_bn:
        in_arrays = (x_pad, w2, tvalid_p)
        in_specs = [x_spec, w_spec, vec_spec]
        out_shape = (out_sds, out_sds, out_sds, out_sds)   # mx, mn, rsum, rsq
        out_specs = (out_spec, out_spec, out_spec, out_spec)
        n_out = 4
    else:
        in_arrays = (x_pad, w2, bias_p, tvalid_p)
        in_specs = [x_spec, w_spec, vec_spec, vec_spec]
        out_shape = out_sds                                 # mx only
        out_specs = out_spec
        n_out = 1

    flops = 2 * B_pad * T_pad * KE * F_pad
    bytes_accessed = ((B_pad * L_x * E + KE * F_pad) * dsize
                      + n_out * B_pad * F_pad * 4 + 2 * F_pad * 4)
    vmem_est = (TB * L_x * E * dsize * 2      # x (double-buffered)
                + KE * FC * dsize * 2         # weight chunk (double-buffered)
                + 4 * FC * 8                  # bias / tvalid
                + TB * T_pad * KE * dsize     # im2col scratch
                + TB * T_pad * FC * 4 * 2     # f32 activation temporaries
                + n_out * TB * FC * 4 * 2)    # outputs (double-buffered)
    vmem_limit = int(min(max(2 * vmem_est, 32 * 2**20), 100 * 2**20))

    # NOTE: the parameter operands are grid-invariant along the batch axis;
    # at larger scales `pipeline_mode=pl.Buffered(1)` on w/bias/tvalid would
    # reclaim their duplicate pipeline buffer (left default here).
    outs = pl.pallas_call(
        kernel,
        out_shape=out_shape,
        grid=(n_btiles, n_fchunks),
        in_specs=in_specs,
        out_specs=out_specs,
        scratch_shapes=[pltpu.VMEM((TB, T_pad, KE), compute_dtype)],
        compiler_params=pltpu.CompilerParams(
            dimension_semantics=("parallel", "parallel"),
            vmem_limit_bytes=vmem_limit),
        cost_estimate=pl.CostEstimate(
            flops=flops, transcendentals=0, bytes_accessed=bytes_accessed),
    )(*in_arrays)

    # ---- tiny BN finalize + concat slice, in plain XLA on (B, F) arrays ----
    if use_bn:
        mx, mn, rsum, rsq = outs
        mx = mx[:B, :F_total]
        mn = mn[:B, :F_total]
        cnt = jnp.float32(B) * tvalid_v.astype(jnp.float32)     # (F_total,)
        s = jnp.sum(rsum[:B, :F_total], axis=0)
        sq = jnp.sum(rsq[:B, :F_total], axis=0)
        mu = s / cnt
        var = jnp.maximum(sq / cnt - mu * mu, 0.0)               # biased var
        scale = gamma_v * jax.lax.rsqrt(var + eps)
        shift = beta_v - scale * mu
        # max_t(scale*x+shift) = scale*max(x)+shift if scale>=0 else scale*min(x)+shift
        return jnp.where(scale >= 0.0, mx, mn) * scale[None, :] + shift[None, :]
    return outs[:B, :F_total]


def textcnn_reference(x, params, *, use_bn=True, eps=1e-5):
    """Pure-JAX reference mirroring the PyTorch forward (training-mode BN)."""
    outs = []
    for (w, gamma, beta, bias) in params:
        K, _, F = w.shape
        L = x.shape[1]
        T = L - K + 1
        acc = jnp.zeros((x.shape[0], T, F), jnp.float32)
        for k in range(K):
            acc = acc + jnp.einsum('ble,ef->blf', x[:, k:k + T, :], w[k],
                                   precision=jax.lax.Precision.HIGHEST)
        if not use_bn:
            acc = acc + bias.reshape(1, 1, F)
        acc = jnp.maximum(acc, 0.0)
        if use_bn:
            mu = jnp.mean(acc, axis=(0, 1), keepdims=True)
            var = jnp.mean((acc - mu) ** 2, axis=(0, 1), keepdims=True)
            acc = (acc - mu) * jax.lax.rsqrt(var + eps)
            acc = acc * gamma.reshape(1, 1, F) + beta.reshape(1, 1, F)
        outs.append(jnp.max(acc, axis=1))
    return jnp.concatenate(outs, axis=1)


def init_params(key, embed_dim, num_filters, filter_sizes, use_bn=True):
    """Synthetic init matching PyTorch defaults (Conv1d U(+-1/sqrt(fan_in)), BN ones/zeros)."""
    params = []
    for K in filter_sizes:
        key, wk, bk = jax.random.split(key, 3)
        bound = 1.0 / float(jnp.sqrt(jnp.float32(embed_dim * K)))
        # stored as (K, E, F); PyTorch Conv1d weight is (F, E, K) transposed
        w = jax.random.uniform(wk, (K, embed_dim, num_filters),
                               jnp.float32, -bound, bound)
        gamma = jnp.ones((num_filters,), jnp.float32)
        beta = jnp.zeros((num_filters,), jnp.float32)
        if use_bn:
            bias = jnp.zeros((num_filters,), jnp.float32)   # Conv1d(bias=False)
        else:
            bias = jax.random.uniform(bk, (num_filters,),
                                      jnp.float32, -bound, bound)
        params.append((w, gamma, beta, bias))
    return params


if __name__ == "__main__":
    # Small shapes consistent with the module: x is (batch, seq_len, embed_dim).
    B, L, E = 8, 16, 32
    num_filters = 16
    filter_sizes = [2, 3, 4, 5, 6]

    key = jax.random.PRNGKey(0)
    key, xk = jax.random.split(key)
    x = jax.random.normal(xk, (B, L, E), jnp.float32)

    for use_bn in (True, False):
        params = init_params(key, E, num_filters, filter_sizes, use_bn=use_bn)
        ref = jax.block_until_ready(textcnn_reference(x, params, use_bn=use_bn))

        # f32 operands: tight check against the full-precision reference.
        out32 = jax.block_until_ready(
            textcnn_forward(x, params, use_bn=use_bn,
                            compute_dtype=jnp.float32))
        assert out32.shape == (B, num_filters * len(filter_sizes)), out32.shape
        err32 = float(jnp.max(jnp.abs(out32 - ref)))
        assert jnp.allclose(out32, ref, atol=2e-2, rtol=2e-2), (use_bn, err32)

        # bf16 operands (default fast path on v5e/v6e/v7x): looser tolerance.
        outbf = jax.block_until_ready(
            textcnn_forward(x, params, use_bn=use_bn))
        errbf = float(jnp.max(jnp.abs(outbf - ref)))
        assert jnp.allclose(outbf, ref, atol=1e-1, rtol=1e-1), (use_bn, errbf)

    print("KERNEL_OK")
</pallas_src>

<mosaic_0001>
module attributes {stable_mosaic.version = 11 : i64} {
  func.func @_textcnn_kernel(%arg0: i32, %arg1: i32, %arg2: memref<8x21x32xf32, #tpu.memory_space<vmem>>, %arg3: memref<192x128xf32, #tpu.memory_space<vmem>>, %arg4: memref<1x128xi32, #tpu.memory_space<vmem>>, %arg5: memref<8x128xf32, #tpu.memory_space<vmem>>, %arg6: memref<8x128xf32, #tpu.memory_space<vmem>>, %arg7: memref<8x128xf32, #tpu.memory_space<vmem>>, %arg8: memref<8x128xf32, #tpu.memory_space<vmem>>, %arg9: memref<8x16x192xf32, #tpu.memory_space<vmem>>) attributes {dimension_semantics = [#tpu.dimension_semantics<parallel>, #tpu.dimension_semantics<parallel>], iteration_bounds = array<i64: 1, 1>, scalar_prefetch = 0 : i64, scratch_operands = 1 : i64, tpu.core_type = #tpu.core_type<tc>, window_params = [{transform_indices = @transform_0, window_bounds = array<i64: 8, 21, 32>}, {transform_indices = @transform_1, window_bounds = array<i64: 192, 128>}, {transform_indices = @transform_2, window_bounds = array<i64: 1, 128>}, {transform_indices = @transform_3, window_bounds = array<i64: 8, 128>}, {transform_indices = @transform_4, window_bounds = array<i64: 8, 128>}, {transform_indices = @transform_5, window_bounds = array<i64: 8, 128>}, {transform_indices = @transform_6, window_bounds = array<i64: 8, 128>}]} {
    %c0 = arith.constant 0 : index
    %c0_0 = arith.constant 0 : index
    %c0_1 = arith.constant 0 : index
    %0 = vector.load %arg2[%c0, %c0_0, %c0_1] : memref<8x21x32xf32, #tpu.memory_space<vmem>>, vector<8x16x32xf32>
    %c0_2 = arith.constant 0 : index
    %c0_3 = arith.constant 0 : index
    %c0_4 = arith.constant 0 : index
    %1 = vector.load %arg9[%c0_2, %c0_3, %c0_4] : memref<8x16x192xf32, #tpu.memory_space<vmem>>, vector<8x16x32xf32>
    tpu.vector_store %arg9[%c0_2, %c0_3, %c0_4], %0 {strides = array<i32>} : memref<8x16x192xf32, #tpu.memory_space<vmem>>, vector<8x16x32xf32>,
    %c0_5 = arith.constant 0 : index
    %c1 = arith.constant 1 : index
    %c0_6 = arith.constant 0 : index
    %2 = vector.load %arg2[%c0_5, %c1, %c0_6] : memref<8x21x32xf32, #tpu.memory_space<vmem>>, vector<8x16x32xf32>
    %c0_7 = arith.constant 0 : index
    %c0_8 = arith.constant 0 : index
    %c32 = arith.constant 32 : index
    %3 = vector.load %arg9[%c0_7, %c0_8, %c32] : memref<8x16x192xf32, #tpu.memory_space<vmem>>, vector<8x16x32xf32>
    tpu.vector_store %arg9[%c0_7, %c0_8, %c32], %2 {strides = array<i32>} : memref<8x16x192xf32, #tpu.memory_space<vmem>>, vector<8x16x32xf32>,
    %c0_9 = arith.constant 0 : index
    %c2 = arith.constant 2 : index
    %c0_10 = arith.constant 0 : index
    %4 = vector.load %arg2[%c0_9, %c2, %c0_10] : memref<8x21x32xf32, #tpu.memory_space<vmem>>, vector<8x16x32xf32>
    %c0_11 = arith.constant 0 : index
    %c0_12 = arith.constant 0 : index
    %c64 = arith.constant 64 : index
    %5 = vector.load %arg9[%c0_11, %c0_12, %c64] : memref<8x16x192xf32, #tpu.memory_space<vmem>>, vector<8x16x32xf32>
    tpu.vector_store %arg9[%c0_11, %c0_12, %c64], %4 {strides = array<i32>} : memref<8x16x192xf32, #tpu.memory_space<vmem>>, vector<8x16x32xf32>,
    %c0_13 = arith.constant 0 : index
    %c3 = arith.constant 3 : index
    %c0_14 = arith.constant 0 : index
    %6 = vector.load %arg2[%c0_13, %c3, %c0_14] : memref<8x21x32xf32, #tpu.memory_space<vmem>>, vector<8x16x32xf32>
    %c0_15 = arith.constant 0 : index
    %c0_16 = arith.constant 0 : index
    %c96 = arith.constant 96 : index
    %7 = vector.load %arg9[%c0_15, %c0_16, %c96] : memref<8x16x192xf32, #tpu.memory_space<vmem>>, vector<8x16x32xf32>
    tpu.vector_store %arg9[%c0_15, %c0_16, %c96], %6 {strides = array<i32>} : memref<8x16x192xf32, #tpu.memory_space<vmem>>, vector<8x16x32xf32>,
    %c0_17 = arith.constant 0 : index
    %c4 = arith.constant 4 : index
    %c0_18 = arith.constant 0 : index
    %8 = vector.load %arg2[%c0_17, %c4, %c0_18] : memref<8x21x32xf32, #tpu.memory_space<vmem>>, vector<8x16x32xf32>
    %c0_19 = arith.constant 0 : index
    %c0_20 = arith.constant 0 : index
    %c128 = arith.constant 128 : index
    %9 = vector.load %arg9[%c0_19, %c0_20, %c128] : memref<8x16x192xf32, #tpu.memory_space<vmem>>, vector<8x16x32xf32>
    tpu.vector_store %arg9[%c0_19, %c0_20, %c128], %8 {strides = array<i32>} : memref<8x16x192xf32, #tpu.memory_space<vmem>>, vector<8x16x32xf32>,
    %c0_21 = arith.constant 0 : index
    %c5 = arith.constant 5 : index
    %c0_22 = arith.constant 0 : index
    %10 = vector.load %arg2[%c0_21, %c5, %c0_22] : memref<8x21x32xf32, #tpu.memory_space<vmem>>, vector<8x16x32xf32>
    %c0_23 = arith.constant 0 : index
    %c0_24 = arith.constant 0 : index
    %c160 = arith.constant 160 : index
    %11 = vector.load %arg9[%c0_23, %c0_24, %c160] : memref<8x16x192xf32, #tpu.memory_space<vmem>>, vector<8x16x32xf32>
    tpu.vector_store %arg9[%c0_23, %c0_24, %c160], %10 {strides = array<i32>} : memref<8x16x192xf32, #tpu.memory_space<vmem>>, vector<8x16x32xf32>,
    %c0_25 = arith.constant 0 : index
    %c0_26 = arith.constant 0 : index
    %c0_27 = arith.constant 0 : index
    %12 = vector.load %arg9[%c0_25, %c0_26, %c0_27] : memref<8x16x192xf32, #tpu.memory_space<vmem>>, vector<8x16x192xf32>
    %13 = vector.shape_cast %12 : vector<8x16x192xf32> to vector<128x192xf32>
    %c0_28 = arith.constant 0 : index
    %c0_29 = arith.constant 0 : index
    %14 = vector.load %arg3[%c0_28, %c0_29] : memref<192x128xf32, #tpu.memory_space<vmem>>, vector<192x128xf32>
    %cst = arith.constant dense<0.000000e+00> : vector<128x128xf32>
    %15 = tpu.matmul %13, %14, %cst {dimension_numbers = #tpu.dot_dimension_numbers<[1], [0], [0], [1], [0, 0, 1, 1], [], []>} : vector<128x192xf32>, vector<192x128xf32>, vector<128x128xf32> -> vector<128x128xf32>
    %16 = vector.shape_cast %15 : vector<128x128xf32> to vector<8x16x128xf32>
    %cst_30 = arith.constant 0.000000e+00 : f32
    %17 = vector.broadcast %cst_30 : f32 to vector<8x16x128xf32>
    %18 = arith.maximumf %16, %17 : vector<8x16x128xf32>
    %19 = tpu.iota {dimensions = array<i32: 1>} : vector<8x16x128xi32>
    %c0_31 = arith.constant 0 : index
    %c0_32 = arith.constant 0 : index
    %20 = vector.load %arg4[%c0_31, %c0_32] : memref<1x128xi32, #tpu.memory_space<vmem>>, vector<1x128xi32>
    %21 = vector.shape_cast %20 : vector<1x128xi32> to vector<1x1x128xi32>
    %22 = vector.broadcast %21 : vector<1x1x128xi32> to vector<8x16x128xi32>
    %23 = arith.cmpi slt, %19, %22 : vector<8x16x128xi32>
    %cst_33 = arith.constant 0xFF800000 : f32
    %24 = vector.broadcast %cst_33 : f32 to vector<8x16x128xf32>
    %25 = arith.select %23, %18, %24 : vector<8x16x128xi1>, vector<8x16x128xf32>
    %cst_34 = arith.constant dense<0xFF800000> : vector<8x128xf32>
    %26 = vector.multi_reduction <maximumf>, %25, %cst_34 [1] : vector<8x16x128xf32> to vector<8x128xf32>
    %c0_35 = arith.constant 0 : index
    %c0_36 = arith.constant 0 : index
    %27 = vector.load %arg5[%c0_35, %c0_36] : memref<8x128xf32, #tpu.memory_space<vmem>>, vector<8x128xf32>
    tpu.vector_store %arg5[%c0_35, %c0_36], %26 {strides = array<i32>} : memref<8x128xf32, #tpu.memory_space<vmem>>, vector<8x128xf32>,
    %cst_37 = arith.constant 0x7F800000 : f32
    %28 = vector.broadcast %cst_37 : f32 to vector<8x16x128xf32>
    %29 = arith.select %23, %18, %28 : vector<8x16x128xi1>, vector<8x16x128xf32>
    %cst_38 = arith.constant dense<0x7F800000> : vector<8x128xf32>
    %30 = vector.multi_reduction <minimumf>, %29, %cst_38 [1] : vector<8x16x128xf32> to vector<8x128xf32>
    %c0_39 = arith.constant 0 : index
    %c0_40 = arith.constant 0 : index
    %31 = vector.load %arg6[%c0_39, %c0_40] : memref<8x128xf32, #tpu.memory_space<vmem>>, vector<8x128xf32>
    tpu.vector_store %arg6[%c0_39, %c0_40], %30 {strides = array<i32>} : memref<8x128xf32, #tpu.memory_space<vmem>>, vector<8x128xf32>,
    %cst_41 = arith.constant 0.000000e+00 : f32
    %32 = vector.broadcast %cst_41 : f32 to vector<8x16x128xf32>
    %33 = arith.select %23, %18, %32 : vector<8x16x128xi1>, vector<8x16x128xf32>
    %cst_42 = arith.constant dense<0.000000e+00> : vector<8x128xf32>
    %34 = vector.multi_reduction <add>, %33, %cst_42 [1] : vector<8x16x128xf32> to vector<8x128xf32>
    %c0_43 = arith.constant 0 : index
    %c0_44 = arith.constant 0 : index
    %35 = vector.load %arg7[%c0_43, %c0_44] : memref<8x128xf32, #tpu.memory_space<vmem>>, vector<8x128xf32>
    tpu.vector_store %arg7[%c0_43, %c0_44], %34 {strides = array<i32>} : memref<8x128xf32, #tpu.memory_space<vmem>>, vector<8x128xf32>,
    %36 = arith.mulf %33, %18 : vector<8x16x128xf32>
    %cst_45 = arith.constant dense<0.000000e+00> : vector<8x128xf32>
    %37 = vector.multi_reduction <add>, %36, %cst_45 [1] : vector<8x16x128xf32> to vector<8x128xf32>
    %c0_46 = arith.constant 0 : index
    %c0_47 = arith.constant 0 : index
    %38 = vector.load %arg8[%c0_46, %c0_47] : memref<8x128xf32, #tpu.memory_space<vmem>>, vector<8x128xf32>
    tpu.vector_store %arg8[%c0_46, %c0_47], %37 {strides = array<i32>} : memref<8x128xf32, #tpu.memory_space<vmem>>, vector<8x128xf32>,
    return
  }
  func.func @transform_0(%arg0: i32, %arg1: i32) -> (i32, i32, i32) {
    %c0_i32 = arith.constant 0 : i32
    %c0_i32_0 = arith.constant 0 : i32
    %c0_i32_1 = arith.constant 0 : i32
    return %arg0, %c0_i32, %c0_i32_0 : i32, i32, i32
  }
  func.func @transform_1(%arg0: i32, %arg1: i32) -> (i32, i32) {
    %c0_i32 = arith.constant 0 : i32
    %c0_i32_0 = arith.constant 0 : i32
    return %c0_i32, %arg1 : i32, i32
  }
  func.func @transform_2(%arg0: i32, %arg1: i32) -> (i32, i32) {
    %c0_i32 = arith.constant 0 : i32
    %c0_i32_0 = arith.constant 0 : i32
    return %c0_i32, %arg1 : i32, i32
  }
  func.func @transform_3(%arg0: i32, %arg1: i32) -> (i32, i32) {
    %c0_i32 = arith.constant 0 : i32
    return %arg0, %arg1 : i32, i32
  }
  func.func @transform_4(%arg0: i32, %arg1: i32) -> (i32, i32) {
    %c0_i32 = arith.constant 0 : i32
    return %arg0, %arg1 : i32, i32
  }
  func.func @transform_5(%arg0: i32, %arg1: i32) -> (i32, i32) {
    %c0_i32 = arith.constant 0 : i32
    return %arg0, %arg1 : i32, i32
  }
  func.func @transform_6(%arg0: i32, %arg1: i32) -> (i32, i32) {
    %c0_i32 = arith.constant 0 : i32
    return %arg0, %arg1 : i32, i32
  }
}

</mosaic_0001>

<llo_original>
// kernel: tpu_custom_call.1
$region0: #{tpu_custom_call.1}
  #allocation0 [shape = 'u32[]', space=smem, size = 0x4, offset = 0x4, fixed_abs, tag = 'smem constant byte address 0x4 - core index']
  #allocation1 [shape = 'u32[144,128]{1,0:T(1,128)}', space=vmem, size = 0x12000, scoped, tag = 'internal scratch']
  #allocation2 [shape = 'f32[8,16,192]{2,1,0:T(8,128)}', space=vmem, size = 0x20000, scoped, tag = 'scratch operand']
  %s0 = inlined_call_operand.vmem [shape: f32[8,21,32], index: 0, kind: input, shape index: {}]
  %s1 = inlined_call_operand.vmem [shape: f32[192,128], index: 1, kind: input, shape index: {}]
  %s2 = inlined_call_operand.vmem [shape: s32[1,128], index: 2, kind: input, shape index: {}]
  %s3 = inlined_call_operand.hbm [shape: f32[8,128], index: 3, kind: output, shape index: {0}]
  %s4 = inlined_call_operand.hbm [shape: f32[8,128], index: 4, kind: output, shape index: {1}]
  %s5 = inlined_call_operand.hbm [shape: f32[8,128], index: 5, kind: output, shape index: {2}]
  %s6 = inlined_call_operand.hbm [shape: f32[8,128], index: 6, kind: output, shape index: {3}]
  %7 = xla_tuple %s3, %s4, %s5, %s6
  %s8 = sld [smem:[#allocation0]]
  $region46: #{tpu_custom_call.1} parent=0
    _
  %s10 = ssub.s32 1, %s8
  %s11 = scalar_select 0, %s10, %s8
  $region1: #{tpu_custom_call.1} parent=0
    #allocation3 [shape = 'u8[4096]{0}', space=vmem, size = 0x1000, scoped, tag = 'output window, operand 0, single buffered']
    #allocation4 [shape = 's32[1]{0}', space=sflag, size = 0x4, scoped, tag = 'scoped memory for tpu_custom_call.1']
    #allocation5 [shape = 'u8[4096]{0}', space=vmem, size = 0x1000, scoped, tag = 'output window, operand 1, single buffered']
    #allocation6 [shape = 's32[1]{0}', space=sflag, size = 0x4, scoped, tag = 'scoped memory for tpu_custom_call.1']
    #allocation7 [shape = 'u8[4096]{0}', space=vmem, size = 0x1000, scoped, tag = 'output window, operand 2, single buffered']
    #allocation8 [shape = 'u8[4096]{0}', space=vmem, size = 0x1000, scoped, tag = 'output window, operand 3, single buffered']
    #allocation9 [shape = 's32[1]{0}', space=sflag, size = 0x4, scoped, tag = 'scoped memory for tpu_custom_call.1']
    %12 = vsyncpa [#allocation4], 0
    %13 = vsyncpa [#allocation6], 0
    %14 = vsyncpa [#allocation9], 0
    // Predicated region
    $region2: #{tpu_custom_call.1} parent=1 // pred_check
      _
    $region3: #{tpu_custom_call.1} parent=1 // pred_check_branch
      %16 = sbr.rel (0) target = $region5
    $region4: #{tpu_custom_call.1} parent=1 // pred_region
      _
    $region5: #{tpu_custom_call.1} parent=1 // pred_fallthru
      _
    // Predicated region
    $region6: #{tpu_custom_call.1} parent=1 // pred_check
      _
    $region7: #{tpu_custom_call.1} parent=1 // pred_check_branch
      %18 = sbr.rel (0) target = $region9
    $region8: #{tpu_custom_call.1} parent=1 // pred_region
      _
    $region9: #{tpu_custom_call.1} parent=1 // pred_fallthru
      _
    // Predicated region
    $region10: #{tpu_custom_call.1} parent=1 // pred_check
      _
    $region11: #{tpu_custom_call.1} parent=1 // pred_check_branch
      %20 = sbr.rel (0) target = $region13
    $region12: #{tpu_custom_call.1} parent=1 // pred_region
      _
    $region13: #{tpu_custom_call.1} parent=1 // pred_fallthru
      _
    %v21 = vld [vmem:[%s0] sm:$0xff]
    %v22 = vld [vmem:[%s0 + $0x8] sm:$0xff]
    %v23 = vld [vmem:[%s0 + $0x18] sm:$0xff]
    %v24 = vld [vmem:[%s0 + $0x20] sm:$0xff]
    %v25 = vld [vmem:[%s0 + $0x30] sm:$0xff]
    %v26 = vld [vmem:[%s0 + $0x38] sm:$0xff]
    %v27 = vld [vmem:[%s0 + $0x48] sm:$0xff]
    %v28 = vld [vmem:[%s0 + $0x50] sm:$0xff]
    %v29 = vld [vmem:[%s0 + $0x60] sm:$0xff]
    %v30 = vld [vmem:[%s0 + $0x68] sm:$0xff]
    %v31 = vld [vmem:[%s0 + $0x78] sm:$0xff]
    %v32 = vld [vmem:[%s0 + $0x80] sm:$0xff]
    %v33 = vld [vmem:[%s0 + $0x90] sm:$0xff]
    %v34 = vld [vmem:[%s0 + $0x98] sm:$0xff]
    %v35 = vld [vmem:[%s0 + $0xa8] sm:$0xff]
    %v36 = vld [vmem:[%s0 + $0xb0] sm:$0xff]
    %vm37 = vcmask 261120
    %38 = vst.msk [vmem:[#allocation2] sm:$0xff] %vm37, %v21
    %39 = vst.msk [vmem:[#allocation2 + $0x10] sm:$0xff] %vm37, %v22
    %40 = vst.msk [vmem:[#allocation2 + $0x20] sm:$0xff] %vm37, %v23
    %41 = vst.msk [vmem:[#allocation2 + $0x30] sm:$0xff] %vm37, %v24
    %42 = vst.msk [vmem:[#allocation2 + $0x40] sm:$0xff] %vm37, %v25
    %43 = vst.msk [vmem:[#allocation2 + $0x50] sm:$0xff] %vm37, %v26
    %44 = vst.msk [vmem:[#allocation2 + $0x60] sm:$0xff] %vm37, %v27
    %45 = vst.msk [vmem:[#allocation2 + $0x70] sm:$0xff] %vm37, %v28
    %46 = vst.msk [vmem:[#allocation2 + $0x80] sm:$0xff] %vm37, %v29
    %47 = vst.msk [vmem:[#allocation2 + $0x90] sm:$0xff] %vm37, %v30
    %48 = vst.msk [vmem:[#allocation2 + $0xa0] sm:$0xff] %vm37, %v31
    %49 = vst.msk [vmem:[#allocation2 + $0xb0] sm:$0xff] %vm37, %v32
    %50 = vst.msk [vmem:[#allocation2 + $0xc0] sm:$0xff] %vm37, %v33
    %51 = vst.msk [vmem:[#allocation2 + $0xd0] sm:$0xff] %vm37, %v34
    %52 = vst.msk [vmem:[#allocation2 + $0xe0] sm:$0xff] %vm37, %v35
    %53 = vst.msk [vmem:[#allocation2 + $0xf0] sm:$0xff] %vm37, %v36
    %v54 = vld [vmem:[%s0 + $0x1] sm:$0xff]
    %v55 = vld [vmem:[%s0 + $0x9] sm:$0xff]
    %v56 = vld [vmem:[%s0 + $0x19] sm:$0xff]
    %v57 = vld [vmem:[%s0 + $0x21] sm:$0xff]
    %v58 = vld [vmem:[%s0 + $0x31] sm:$0xff]
    %v59 = vld [vmem:[%s0 + $0x39] sm:$0xff]
    %v60 = vld [vmem:[%s0 + $0x49] sm:$0xff]
    %v61 = vld [vmem:[%s0 + $0x51] sm:$0xff]
    %v62 = vld [vmem:[%s0 + $0x61] sm:$0xff]
    %v63 = vld [vmem:[%s0 + $0x69] sm:$0xff]
    %v64 = vld [vmem:[%s0 + $0x79] sm:$0xff]
    %v65 = vld [vmem:[%s0 + $0x81] sm:$0xff]
    %v66 = vld [vmem:[%s0 + $0x91] sm:$0xff]
    %v67 = vld [vmem:[%s0 + $0x99] sm:$0xff]
    %v68 = vld [vmem:[%s0 + $0xa9] sm:$0xff]
    %v69 = vld [vmem:[%s0 + $0xb1] sm:$0xff]
    %86 = vrot.lane.b32.xlu0 %v54, 32
    %v87 = vpop.permute.xlu0 %86
    %88 = vrot.lane.b32.xlu0 %v55, 32
    %v89 = vpop.permute.xlu0 %88
    %90 = vrot.lane.b32.xlu0 %v56, 32
    %v91 = vpop.permute.xlu0 %90
    %92 = vrot.lane.b32.xlu0 %v57, 32
    %v93 = vpop.permute.xlu0 %92
    %94 = vrot.lane.b32.xlu0 %v58, 32
    %v95 = vpop.permute.xlu0 %94
    %96 = vrot.lane.b32.xlu0 %v59, 32
    %v97 = vpop.permute.xlu0 %96
    %98 = vrot.lane.b32.xlu0 %v60, 32
    %v99 = vpop.permute.xlu0 %98
    %100 = vrot.lane.b32.xlu0 %v61, 32
    %v101 = vpop.permute.xlu0 %100
    %102 = vrot.lane.b32.xlu0 %v62, 32
    %v103 = vpop.permute.xlu0 %102
    %104 = vrot.lane.b32.xlu0 %v63, 32
    %v105 = vpop.permute.xlu0 %104
    %106 = vrot.lane.b32.xlu0 %v64, 32
    %v107 = vpop.permute.xlu0 %106
    %108 = vrot.lane.b32.xlu0 %v65, 32
    %v109 = vpop.permute.xlu0 %108
    %110 = vrot.lane.b32.xlu0 %v66, 32
    %v111 = vpop.permute.xlu0 %110
    %112 = vrot.lane.b32.xlu0 %v67, 32
    %v113 = vpop.permute.xlu0 %112
    %114 = vrot.lane.b32.xlu0 %v68, 32
    %v115 = vpop.permute.xlu0 %114
    %116 = vrot.lane.b32.xlu0 %v69, 32
    %v117 = vpop.permute.xlu0 %116
    %vm134 = vcmask 523520
    %135 = vst.msk [vmem:[#allocation2] sm:$0xff] %vm134, %v87
    %136 = vst.msk [vmem:[#allocation2 + $0x10] sm:$0xff] %vm134, %v89
    %137 = vst.msk [vmem:[#allocation2 + $0x20] sm:$0xff] %vm134, %v91
    %138 = vst.msk [vmem:[#allocation2 + $0x30] sm:$0xff] %vm134, %v93
    %139 = vst.msk [vmem:[#allocation2 + $0x40] sm:$0xff] %vm134, %v95
    %140 = vst.msk [vmem:[#allocation2 + $0x50] sm:$0xff] %vm134, %v97
    %141 = vst.msk [vmem:[#allocation2 + $0x60] sm:$0xff] %vm134, %v99
    %142 = vst.msk [vmem:[#allocation2 + $0x70] sm:$0xff] %vm134, %v101
    %143 = vst.msk [vmem:[#allocation2 + $0x80] sm:$0xff] %vm134, %v103
    %144 = vst.msk [vmem:[#allocation2 + $0x90] sm:$0xff] %vm134, %v105
    %145 = vst.msk [vmem:[#allocation2 + $0xa0] sm:$0xff] %vm134, %v107
    %146 = vst.msk [vmem:[#allocation2 + $0xb0] sm:$0xff] %vm134, %v109
    %147 = vst.msk [vmem:[#allocation2 + $0xc0] sm:$0xff] %vm134, %v111
    %148 = vst.msk [vmem:[#allocation2 + $0xd0] sm:$0xff] %vm134, %v113
    %149 = vst.msk [vmem:[#allocation2 + $0xe0] sm:$0xff] %vm134, %v115
    %150 = vst.msk [vmem:[#allocation2 + $0xf0] sm:$0xff] %vm134, %v117
    %v151 = vld [vmem:[%s0 + $0x2] sm:$0xff]
    %v152 = vld [vmem:[%s0 + $0xa] sm:$0xff]
    %v153 = vld [vmem:[%s0 + $0x1a] sm:$0xff]
    %v154 = vld [vmem:[%s0 + $0x22] sm:$0xff]
    %v155 = vld [vmem:[%s0 + $0x32] sm:$0xff]
    %v156 = vld [vmem:[%s0 + $0x3a] sm:$0xff]
    %v157 = vld [vmem:[%s0 + $0x4a] sm:$0xff]
    %v158 = vld [vmem:[%s0 + $0x52] sm:$0xff]
    %v159 = vld [vmem:[%s0 + $0x62] sm:$0xff]
    %v160 = vld [vmem:[%s0 + $0x6a] sm:$0xff]
    %v161 = vld [vmem:[%s0 + $0x7a] sm:$0xff]
    %v162 = vld [vmem:[%s0 + $0x82] sm:$0xff]
    %v163 = vld [vmem:[%s0 + $0x92] sm:$0xff]
    %v164 = vld [vmem:[%s0 + $0x9a] sm:$0xff]
    %v165 = vld [vmem:[%s0 + $0xaa] sm:$0xff]
    %v166 = vld [vmem:[%s0 + $0xb2] sm:$0xff]
    %183 = vrot.lane.b32.xlu0 %v151, 64
    %v184 = vpop.permute.xlu0 %183
    %185 = vrot.lane.b32.xlu0 %v152, 64
    %v186 = vpop.permute.xlu0 %185
    %187 = vrot.lane.b32.xlu0 %v153, 64
    %v188 = vpop.permute.xlu0 %187
    %189 = vrot.lane.b32.xlu0 %v154, 64
    %v190 = vpop.permute.xlu0 %189
    %191 = vrot.lane.b32.xlu0 %v155, 64
    %v192 = vpop.permute.xlu0 %191
    %193 = vrot.lane.b32.xlu0 %v156, 64
    %v194 = vpop.permute.xlu0 %193
    %195 = vrot.lane.b32.xlu0 %v157, 64
    %v196 = vpop.permute.xlu0 %195
    %197 = vrot.lane.b32.xlu0 %v158, 64
    %v198 = vpop.permute.xlu0 %197
    %199 = vrot.lane.b32.xlu0 %v159, 64
    %v200 = vpop.permute.xlu0 %199
    %201 = vrot.lane.b32.xlu0 %v160, 64
    %v202 = vpop.permute.xlu0 %201
    %203 = vrot.lane.b32.xlu0 %v161, 64
    %v204 = vpop.permute.xlu0 %203
    %205 = vrot.lane.b32.xlu0 %v162, 64
    %v206 = vpop.permute.xlu0 %205
    %207 = vrot.lane.b32.xlu0 %v163, 64
    %v208 = vpop.permute.xlu0 %207
    %209 = vrot.lane.b32.xlu0 %v164, 64
    %v210 = vpop.permute.xlu0 %209
    %211 = vrot.lane.b32.xlu0 %v165, 64
    %v212 = vpop.permute.xlu0 %211
    %213 = vrot.lane.b32.xlu0 %v166, 64
    %v214 = vpop.permute.xlu0 %213
    %vm231 = vcmask 785920
    %232 = vst.msk [vmem:[#allocation2] sm:$0xff] %vm231, %v184
    %233 = vst.msk [vmem:[#allocation2 + $0x10] sm:$0xff] %vm231, %v186
    %234 = vst.msk [vmem:[#allocation2 + $0x20] sm:$0xff] %vm231, %v188
    %235 = vst.msk [vmem:[#allocation2 + $0x30] sm:$0xff] %vm231, %v190
    %236 = vst.msk [vmem:[#allocation2 + $0x40] sm:$0xff] %vm231, %v192
    %237 = vst.msk [vmem:[#allocation2 + $0x50] sm:$0xff] %vm231, %v194
    %238 = vst.msk [vmem:[#allocation2 + $0x60] sm:$0xff] %vm231, %v196
    %239 = vst.msk [vmem:[#allocation2 + $0x70] sm:$0xff] %vm231, %v198
    %240 = vst.msk [vmem:[#allocation2 + $0x80] sm:$0xff] %vm231, %v200
    %241 = vst.msk [vmem:[#allocation2 + $0x90] sm:$0xff] %vm231, %v202
    %242 = vst.msk [vmem:[#allocation2 + $0xa0] sm:$0xff] %vm231, %v204
    %243 = vst.msk [vmem:[#allocation2 + $0xb0] sm:$0xff] %vm231, %v206
    %244 = vst.msk [vmem:[#allocation2 + $0xc0] sm:$0xff] %vm231, %v208
    %245 = vst.msk [vmem:[#allocation2 + $0xd0] sm:$0xff] %vm231, %v210
    %246 = vst.msk [vmem:[#allocation2 + $0xe0] sm:$0xff] %vm231, %v212
    %247 = vst.msk [vmem:[#allocation2 + $0xf0] sm:$0xff] %vm231, %v214
    %v248 = vld [vmem:[%s0 + $0x3] sm:$0xff]
    %v249 = vld [vmem:[%s0 + $0xb] sm:$0xff]
    %v250 = vld [vmem:[%s0 + $0x1b] sm:$0xff]
    %v251 = vld [vmem:[%s0 + $0x23] sm:$0xff]
    %v252 = vld [vmem:[%s0 + $0x33] sm:$0xff]
    %v253 = vld [vmem:[%s0 + $0x3b] sm:$0xff]
    %v254 = vld [vmem:[%s0 + $0x4b] sm:$0xff]
    %v255 = vld [vmem:[%s0 + $0x53] sm:$0xff]
    %v256 = vld [vmem:[%s0 + $0x63] sm:$0xff]
    %v257 = vld [vmem:[%s0 + $0x6b] sm:$0xff]
    %v258 = vld [vmem:[%s0 + $0x7b] sm:$0xff]
    %v259 = vld [vmem:[%s0 + $0x83] sm:$0xff]
    %v260 = vld [vmem:[%s0 + $0x93] sm:$0xff]
    %v261 = vld [vmem:[%s0 + $0x9b] sm:$0xff]
    %v262 = vld [vmem:[%s0 + $0xab] sm:$0xff]
    %v263 = vld [vmem:[%s0 + $0xb3] sm:$0xff]
    %280 = vrot.lane.b32.xlu0 %v248, 96
    %v281 = vpop.permute.xlu0 %280
    %282 = vrot.lane.b32.xlu0 %v249, 96
    %v283 = vpop.permute.xlu0 %282
    %284 = vrot.lane.b32.xlu0 %v250, 96
    %v285 = vpop.permute.xlu0 %284
    %286 = vrot.lane.b32.xlu0 %v251, 96
    %v287 = vpop.permute.xlu0 %286
    %288 = vrot.lane.b32.xlu0 %v252, 96
    %v289 = vpop.permute.xlu0 %288
    %290 = vrot.lane.b32.xlu0 %v253, 96
    %v291 = vpop.permute.xlu0 %290
    %292 = vrot.lane.b32.xlu0 %v254, 96
    %v293 = vpop.permute.xlu0 %292
    %294 = vrot.lane.b32.xlu0 %v255, 96
    %v295 = vpop.permute.xlu0 %294
    %296 = vrot.lane.b32.xlu0 %v256, 96
    %v297 = vpop.permute.xlu0 %296
    %298 = vrot.lane.b32.xlu0 %v257, 96
    %v299 = vpop.permute.xlu0 %298
    %300 = vrot.lane.b32.xlu0 %v258, 96
    %v301 = vpop.permute.xlu0 %300
    %302 = vrot.lane.b32.xlu0 %v259, 96
    %v303 = vpop.permute.xlu0 %302
    %304 = vrot.lane.b32.xlu0 %v260, 96
    %v305 = vpop.permute.xlu0 %304
    %306 = vrot.lane.b32.xlu0 %v261, 96
    %v307 = vpop.permute.xlu0 %306
    %308 = vrot.lane.b32.xlu0 %v262, 96
    %v309 = vpop.permute.xlu0 %308
    %310 = vrot.lane.b32.xlu0 %v263, 96
    %v311 = vpop.permute.xlu0 %310
    %vm328 = vcmask 1048320
    %329 = vst.msk [vmem:[#allocation2] sm:$0xff] %vm328, %v281
    %330 = vst.msk [vmem:[#allocation2 + $0x10] sm:$0xff] %vm328, %v283
    %331 = vst.msk [vmem:[#allocation2 + $0x20] sm:$0xff] %vm328, %v285
    %332 = vst.msk [vmem:[#allocation2 + $0x30] sm:$0xff] %vm328, %v287
    %333 = vst.msk [vmem:[#allocation2 + $0x40] sm:$0xff] %vm328, %v289
    %334 = vst.msk [vmem:[#allocation2 + $0x50] sm:$0xff] %vm328, %v291
    %335 = vst.msk [vmem:[#allocation2 + $0x60] sm:$0xff] %vm328, %v293
    %336 = vst.msk [vmem:[#allocation2 + $0x70] sm:$0xff] %vm328, %v295
    %337 = vst.msk [vmem:[#allocation2 + $0x80] sm:$0xff] %vm328, %v297
    %338 = vst.msk [vmem:[#allocation2 + $0x90] sm:$0xff] %vm328, %v299
    %339 = vst.msk [vmem:[#allocation2 + $0xa0] sm:$0xff] %vm328, %v301
    %340 = vst.msk [vmem:[#allocation2 + $0xb0] sm:$0xff] %vm328, %v303
    %341 = vst.msk [vmem:[#allocation2 + $0xc0] sm:$0xff] %vm328, %v305
    %342 = vst.msk [vmem:[#allocation2 + $0xd0] sm:$0xff] %vm328, %v307
    %343 = vst.msk [vmem:[#allocation2 + $0xe0] sm:$0xff] %vm328, %v309
    %344 = vst.msk [vmem:[#allocation2 + $0xf0] sm:$0xff] %vm328, %v311
    %v345 = vld [vmem:[%s0 + $0x4] sm:$0xff]
    %v346 = vld [vmem:[%s0 + $0xc] sm:$0xff]
    %v347 = vld [vmem:[%s0 + $0x1c] sm:$0xff]
    %v348 = vld [vmem:[%s0 + $0x24] sm:$0xff]
    %v349 = vld [vmem:[%s0 + $0x34] sm:$0xff]
    %v350 = vld [vmem:[%s0 + $0x3c] sm:$0xff]
    %v351 = vld [vmem:[%s0 + $0x4c] sm:$0xff]
    %v352 = vld [vmem:[%s0 + $0x54] sm:$0xff]
    %v353 = vld [vmem:[%s0 + $0x64] sm:$0xff]
    %v354 = vld [vmem:[%s0 + $0x6c] sm:$0xff]
    %v355 = vld [vmem:[%s0 + $0x7c] sm:$0xff]
    %v356 = vld [vmem:[%s0 + $0x84] sm:$0xff]
    %v357 = vld [vmem:[%s0 + $0x94] sm:$0xff]
    %v358 = vld [vmem:[%s0 + $0x9c] sm:$0xff]
    %v359 = vld [vmem:[%s0 + $0xac] sm:$0xff]
    %v360 = vld [vmem:[%s0 + $0xb4] sm:$0xff]
    %361 = vst.msk [vmem:[#allocation2 + $0x8] sm:$0xff] %vm37, %v345
    %362 = vst.msk [vmem:[#allocation2 + $0x18] sm:$0xff] %vm37, %v346
    %363 = vst.msk [vmem:[#allocation2 + $0x28] sm:$0xff] %vm37, %v347
    %364 = vst.msk [vmem:[#allocation2 + $0x38] sm:$0xff] %vm37, %v348
    %365 = vst.msk [vmem:[#allocation2 + $0x48] sm:$0xff] %vm37, %v349
    %366 = vst.msk [vmem:[#allocation2 + $0x58] sm:$0xff] %vm37, %v350
    %367 = vst.msk [vmem:[#allocation2 + $0x68] sm:$0xff] %vm37, %v351
    %368 = vst.msk [vmem:[#allocation2 + $0x78] sm:$0xff] %vm37, %v352
    %369 = vst.msk [vmem:[#allocation2 + $0x88] sm:$0xff] %vm37, %v353
    %370 = vst.msk [vmem:[#allocation2 + $0x98] sm:$0xff] %vm37, %v354
    %371 = vst.msk [vmem:[#allocation2 + $0xa8] sm:$0xff] %vm37, %v355
    %372 = vst.msk [vmem:[#allocation2 + $0xb8] sm:$0xff] %vm37, %v356
    %373 = vst.msk [vmem:[#allocation2 + $0xc8] sm:$0xff] %vm37, %v357
    %374 = vst.msk [vmem:[#allocation2 + $0xd8] sm:$0xff] %vm37, %v358
    %375 = vst.msk [vmem:[#allocation2 + $0xe8] sm:$0xff] %vm37, %v359
    %376 = vst.msk [vmem:[#allocation2 + $0xf8] sm:$0xff] %vm37, %v360
    %v377 = vld [vmem:[%s0 + $0x5] sm:$0xff]
    %v378 = vld [vmem:[%s0 + $0xd] sm:$0xff]
    %v379 = vld [vmem:[%s0 + $0x1d] sm:$0xff]
    %v380 = vld [vmem:[%s0 + $0x25] sm:$0xff]
    %v381 = vld [vmem:[%s0 + $0x35] sm:$0xff]
    %v382 = vld [vmem:[%s0 + $0x3d] sm:$0xff]
    %v383 = vld [vmem:[%s0 + $0x4d] sm:$0xff]
    %v384 = vld [vmem:[%s0 + $0x55] sm:$0xff]
    %v385 = vld [vmem:[%s0 + $0x65] sm:$0xff]
    %v386 = vld [vmem:[%s0 + $0x6d] sm:$0xff]
    %v387 = vld [vmem:[%s0 + $0x7d] sm:$0xff]
    %v388 = vld [vmem:[%s0 + $0x85] sm:$0xff]
    %v389 = vld [vmem:[%s0 + $0x95] sm:$0xff]
    %v390 = vld [vmem:[%s0 + $0x9d] sm:$0xff]
    %v391 = vld [vmem:[%s0 + $0xad] sm:$0xff]
    %v392 = vld [vmem:[%s0 + $0xb5] sm:$0xff]
    %409 = vrot.lane.b32.xlu0 %v377, 32
    %v410 = vpop.permute.xlu0 %409
    %411 = vrot.lane.b32.xlu0 %v378, 32
    %v412 = vpop.permute.xlu0 %411
    %413 = vrot.lane.b32.xlu0 %v379, 32
    %v414 = vpop.permute.xlu0 %413
    %415 = vrot.lane.b32.xlu0 %v380, 32
    %v416 = vpop.permute.xlu0 %415
    %417 = vrot.lane.b32.xlu0 %v381, 32
    %v418 = vpop.permute.xlu0 %417
    %419 = vrot.lane.b32.xlu0 %v382, 32
    %v420 = vpop.permute.xlu0 %419
    %421 = vrot.lane.b32.xlu0 %v383, 32
    %v422 = vpop.permute.xlu0 %421
    %423 = vrot.lane.b32.xlu0 %v384, 32
    %v424 = vpop.permute.xlu0 %423
    %425 = vrot.lane.b32.xlu0 %v385, 32
    %v426 = vpop.permute.xlu0 %425
    %427 = vrot.lane.b32.xlu0 %v386, 32
    %v428 = vpop.permute.xlu0 %427
    %429 = vrot.lane.b32.xlu0 %v387, 32
    %v430 = vpop.permute.xlu0 %429
    %431 = vrot.lane.b32.xlu0 %v388, 32
    %v432 = vpop.permute.xlu0 %431
    %433 = vrot.lane.b32.xlu0 %v389, 32
    %v434 = vpop.permute.xlu0 %433
    %435 = vrot.lane.b32.xlu0 %v390, 32
    %v436 = vpop.permute.xlu0 %435
    %437 = vrot.lane.b32.xlu0 %v391, 32
    %v438 = vpop.permute.xlu0 %437
    %439 = vrot.lane.b32.xlu0 %v392, 32
    %v440 = vpop.permute.xlu0 %439
    %457 = vst.msk [vmem:[#allocation2 + $0x8] sm:$0xff] %vm134, %v410
    %458 = vst.msk [vmem:[#allocation2 + $0x18] sm:$0xff] %vm134, %v412
    %459 = vst.msk [vmem:[#allocation2 + $0x28] sm:$0xff] %vm134, %v414
    %460 = vst.msk [vmem:[#allocation2 + $0x38] sm:$0xff] %vm134, %v416
    %461 = vst.msk [vmem:[#allocation2 + $0x48] sm:$0xff] %vm134, %v418
    %462 = vst.msk [vmem:[#allocation2 + $0x58] sm:$0xff] %vm134, %v420
    %463 = vst.msk [vmem:[#allocation2 + $0x68] sm:$0xff] %vm134, %v422
    %464 = vst.msk [vmem:[#allocation2 + $0x78] sm:$0xff] %vm134, %v424
    %465 = vst.msk [vmem:[#allocation2 + $0x88] sm:$0xff] %vm134, %v426
    %466 = vst.msk [vmem:[#allocation2 + $0x98] sm:$0xff] %vm134, %v428
    %467 = vst.msk [vmem:[#allocation2 + $0xa8] sm:$0xff] %vm134, %v430
    %468 = vst.msk [vmem:[#allocation2 + $0xb8] sm:$0xff] %vm134, %v432
    %469 = vst.msk [vmem:[#allocation2 + $0xc8] sm:$0xff] %vm134, %v434
    %470 = vst.msk [vmem:[#allocation2 + $0xd8] sm:$0xff] %vm134, %v436
    %471 = vst.msk [vmem:[#allocation2 + $0xe8] sm:$0xff] %vm134, %v438
    %472 = vst.msk [vmem:[#allocation2 + $0xf8] sm:$0xff] %vm134, %v440
    %v473 = vld [vmem:[#allocation2] sm:$0xff]
    %v474 = vld [vmem:[#allocation2 + $0x8] sm:$0xff]
    %v475 = vld [vmem:[#allocation2 + $0x10] sm:$0xff]
    %v476 = vld [vmem:[#allocation2 + $0x18] sm:$0xff]
    %v477 = vld [vmem:[#allocation2 + $0x20] sm:$0xff]
    %v478 = vld [vmem:[#allocation2 + $0x28] sm:$0xff]
    %v479 = vld [vmem:[#allocation2 + $0x30] sm:$0xff]
    %v480 = vld [vmem:[#allocation2 + $0x38] sm:$0xff]
    %v481 = vld [vmem:[#allocation2 + $0x40] sm:$0xff]
    %v482 = vld [vmem:[#allocation2 + $0x48] sm:$0xff]
    %v483 = vld [vmem:[#allocation2 + $0x50] sm:$0xff]
    %v484 = vld [vmem:[#allocation2 + $0x58] sm:$0xff]
    %v485 = vld [vmem:[#allocation2 + $0x60] sm:$0xff]
    %v486 = vld [vmem:[#allocation2 + $0x68] sm:$0xff]
    %v487 = vld [vmem:[#allocation2 + $0x70] sm:$0xff]
    %v488 = vld [vmem:[#allocation2 + $0x78] sm:$0xff]
    %v489 = vld [vmem:[#allocation2 + $0x80] sm:$0xff]
    %v490 = vld [vmem:[#allocation2 + $0x88] sm:$0xff]
    %v491 = vld [vmem:[#allocation2 + $0x90] sm:$0xff]
    %v492 = vld [vmem:[#allocation2 + $0x98] sm:$0xff]
    %v493 = vld [vmem:[#allocation2 + $0xa0] sm:$0xff]
    %v494 = vld [vmem:[#allocation2 + $0xa8] sm:$0xff]
    %v495 = vld [vmem:[#allocation2 + $0xb0] sm:$0xff]
    %v496 = vld [vmem:[#allocation2 + $0xb8] sm:$0xff]
    %v497 = vld [vmem:[#allocation2 + $0xc0] sm:$0xff]
    %v498 = vld [vmem:[#allocation2 + $0xc8] sm:$0xff]
    %v499 = vld [vmem:[#allocation2 + $0xd0] sm:$0xff]
    %v500 = vld [vmem:[#allocation2 + $0xd8] sm:$0xff]
    %v501 = vld [vmem:[#allocation2 + $0xe0] sm:$0xff]
    %v502 = vld [vmem:[#allocation2 + $0xe8] sm:$0xff]
    %v503 = vld [vmem:[#allocation2 + $0xf0] sm:$0xff]
    %v504 = vld [vmem:[#allocation2 + $0xf8] sm:$0xff]
    %v505 = vld [vmem:[%s1] sm:$0xff]
    %v506 = vld [vmem:[%s1 + $0x8] sm:$0xff]
    %v507 = vld [vmem:[%s1 + $0x10] sm:$0xff]
    %v508 = vld [vmem:[%s1 + $0x18] sm:$0xff]
    %v509 = vld [vmem:[%s1 + $0x20] sm:$0xff]
    %v510 = vld [vmem:[%s1 + $0x28] sm:$0xff]
    %v511 = vld [vmem:[%s1 + $0x30] sm:$0xff]
    %v512 = vld [vmem:[%s1 + $0x38] sm:$0xff]
    %v513 = vld [vmem:[%s1 + $0x40] sm:$0xff]
    %v514 = vld [vmem:[%s1 + $0x48] sm:$0xff]
    %v515 = vld [vmem:[%s1 + $0x50] sm:$0xff]
    %v516 = vld [vmem:[%s1 + $0x58] sm:$0xff]
    %v517 = vld [vmem:[%s1 + $0x60] sm:$0xff]
    %v518 = vld [vmem:[%s1 + $0x68] sm:$0xff]
    %v519 = vld [vmem:[%s1 + $0x70] sm:$0xff]
    %v520 = vld [vmem:[%s1 + $0x78] sm:$0xff]
    %v521 = vld [vmem:[%s1 + $0x80] sm:$0xff]
    %v522 = vld [vmem:[%s1 + $0x88] sm:$0xff]
    %v523 = vld [vmem:[%s1 + $0x90] sm:$0xff]
    %v524 = vld [vmem:[%s1 + $0x98] sm:$0xff]
    %v525 = vld [vmem:[%s1 + $0xa0] sm:$0xff]
    %v526 = vld [vmem:[%s1 + $0xa8] sm:$0xff]
    %v527 = vld [vmem:[%s1 + $0xb0] sm:$0xff]
    %v528 = vld [vmem:[%s1 + $0xb8] sm:$0xff]
    %vm529 = vcmask 523264
    %v531 = vsel %vm529, %v474, 0
    %v534 = vsel %vm529, %v476, 0
    %v537 = vsel %vm529, %v478, 0
    %v540 = vsel %vm529, %v480, 0
    %v543 = vsel %vm529, %v482, 0
    %v546 = vsel %vm529, %v484, 0
    %v549 = vsel %vm529, %v486, 0
    %v552 = vsel %vm529, %v488, 0
    %v555 = vsel %vm529, %v490, 0
    %v558 = vsel %vm529, %v492, 0
    %v561 = vsel %vm529, %v494, 0
    %v564 = vsel %vm529, %v496, 0
    %v567 = vsel %vm529, %v498, 0
    %v570 = vsel %vm529, %v500, 0
    %v573 = vsel %vm529, %v502, 0
    %v576 = vsel %vm529, %v504, 0
    %578 = vmatprep.subr.mxu0 0.0
    %579 = vmatpush1.msra.mxu0 %v505
    %580 = vmatprep.subr.mxu0 0.0
    %581 = vmatpush1.msra.mxu0 %v506
    %582 = vmatprep.subr.mxu0 0.0
    %583 = vmatpush1.msra.mxu0 %v507
    %584 = vmatprep.subr.mxu0 0.0
    %585 = vmatpush1.msra.mxu0 %v508
    %586 = vmatprep.subr.mxu0 0.0
    %587 = vmatpush1.msra.mxu0 %v509
    %588 = vmatprep.subr.mxu0 0.0
    %589 = vmatpush1.msra.mxu0 %v510
    %590 = vmatprep.subr.mxu0 0.0
    %591 = vmatpush1.msra.mxu0 %v511
    %592 = vmatprep.subr.mxu0 0.0
    %593 = vmatpush1.msra.mxu0 %v512
    %594 = vmatprep.subr.mxu0 0.0
    %595 = vmatpush1.msra.mxu0 %v513
    %596 = vmatprep.subr.mxu0 0.0
    %597 = vmatpush1.msra.mxu0 %v514
    %598 = vmatprep.subr.mxu0 0.0
    %599 = vmatpush1.msra.mxu0 %v515
    %600 = vmatprep.subr.mxu0 0.0
    %601 = vmatpush1.msra.mxu0 %v516
    %602 = vmatprep.subr.mxu0 0.0
    %603 = vmatpush1.msra.mxu0 %v517
    %604 = vmatprep.subr.mxu0 0.0
    %605 = vmatpush1.msra.mxu0 %v518
    %606 = vmatprep.subr.mxu0 0.0
    %607 = vmatpush1.msra.mxu0 %v519
    %608 = vmatprep.subr.mxu0 0.0
    %609 = vmatpush1.msra.mxu0 %v520
    %610 = vmatprep.subr.mxu0 0.0
    %611 = vmatpush1.msra.mxu0 %v521
    %612 = vmatprep.subr.mxu0 0.0
    %613 = vmatpush1.msra.mxu0 %v522
    %614 = vmatprep.subr.mxu0 0.0
    %615 = vmatpush1.msra.mxu0 %v523
    %616 = vmatprep.subr.mxu0 0.0
    %617 = vmatpush1.msra.mxu0 %v524
    %618 = vmatprep.subr.mxu0 0.0
    %619 = vmatpush1.msra.mxu0 %v525
    %620 = vmatprep.subr.mxu0 0.0
    %621 = vmatpush1.msra.mxu0 %v526
    %622 = vmatprep.subr.mxu0 0.0
    %623 = vmatpush1.msra.mxu0 %v527
    %624 = vmatprep.subr.mxu0 0.0
    %625 = vmatpush1.msra.mxu0 %v528
    %626 = vmatprep.subr.mxu0 0.0
    %627 = vmatpush1.msra.mxu0 0.0
    %628 = vmatprep.subr.mxu0 0.0
    %629 = vmatpush1.msra.mxu0 0.0
    %630 = vmatprep.subr.mxu0 0.0
    %631 = vmatpush1.msra.mxu0 0.0
    %632 = vmatprep.subr.mxu0 0.0
    %633 = vmatpush1.msra.mxu0 0.0
    %634 = vmatprep.subr.mxu0 0.0
    %635 = vmatpush1.msra.mxu0 0.0
    %636 = vmatprep.subr.mxu0 0.0
    %637 = vmatpush1.msra.mxu0 0.0
    %638 = vmatprep.subr.mxu0 0.0
    %639 = vmatpush1.msra.mxu0 0.0
    %640 = vmatprep.subr.mxu0 0.0
    %641 = vmatpush1.msra.mxu0 0.0
    %642 = vmatprep.mubr.f32.mxu0 %v531
    %643 = vmatmul.mubr.f32.gmra.mrb[0].mxu0 %v473
    %v644 = vpop.f32.mrb[0].mxu0
    %v645 = vadd.f32 0.0, %v644
    %v646 = vpop.f32.mrb[0].mxu0
    %647 = vmatprep.mubr.f32.mxu0 %v534
    %648 = vmatmul.mubr.f32.gmra.mrb[0].mxu0 %v475
    %v649 = vpop.f32.mrb[0].mxu0
    %v650 = vadd.f32 0.0, %v649
    %v651 = vpop.f32.mrb[0].mxu0
    %652 = vmatprep.mubr.f32.mxu0 %v537
    %653 = vmatmul.mubr.f32.gmra.mrb[0].mxu0 %v477
    %v654 = vpop.f32.mrb[0].mxu0
    %v655 = vadd.f32 0.0, %v654
    %v656 = vpop.f32.mrb[0].mxu0
    %657 = vmatprep.mubr.f32.mxu0 %v540
    %658 = vmatmul.mubr.f32.gmra.mrb[0].mxu0 %v479
    %v659 = vpop.f32.mrb[0].mxu0
    %v660 = vadd.f32 0.0, %v659
    %v661 = vpop.f32.mrb[0].mxu0
    %662 = vmatprep.mubr.f32.mxu0 %v543
    %663 = vmatmul.mubr.f32.gmra.mrb[0].mxu0 %v481
    %v664 = vpop.f32.mrb[0].mxu0
    %v665 = vadd.f32 0.0, %v664
    %v666 = vpop.f32.mrb[0].mxu0
    %667 = vmatprep.mubr.f32.mxu0 %v546
    %668 = vmatmul.mubr.f32.gmra.mrb[0].mxu0 %v483
    %v669 = vpop.f32.mrb[0].mxu0
    %v670 = vadd.f32 0.0, %v669
    %v671 = vpop.f32.mrb[0].mxu0
    %672 = vmatprep.mubr.f32.mxu0 %v549
    %673 = vmatmul.mubr.f32.gmra.mrb[0].mxu0 %v485
    %v674 = vpop.f32.mrb[0].mxu0
    %v675 = vadd.f32 0.0, %v674
    %v676 = vpop.f32.mrb[0].mxu0
    %677 = vmatprep.mubr.f32.mxu0 %v552
    %678 = vmatmul.mubr.f32.gmra.mrb[0].mxu0 %v487
    %v679 = vpop.f32.mrb[0].mxu0
    %v680 = vadd.f32 0.0, %v679
    %v681 = vpop.f32.mrb[0].mxu0
    %682 = vmatprep.mubr.f32.mxu0 %v555
    %683 = vmatmul.mubr.f32.gmra.mrb[0].mxu0 %v489
    %v684 = vpop.f32.mrb[0].mxu0
    %v685 = vadd.f32 0.0, %v684
    %v686 = vpop.f32.mrb[0].mxu0
    %687 = vmatprep.mubr.f32.mxu0 %v558
    %688 = vmatmul.mubr.f32.gmra.mrb[0].mxu0 %v491
    %v689 = vpop.f32.mrb[0].mxu0
    %v690 = vadd.f32 0.0, %v689
    %v691 = vpop.f32.mrb[0].mxu0
    %692 = vmatprep.mubr.f32.mxu0 %v561
    %693 = vmatmul.mubr.f32.gmra.mrb[0].mxu0 %v493
    %v694 = vpop.f32.mrb[0].mxu0
    %v695 = vadd.f32 0.0, %v694
    %v696 = vpop.f32.mrb[0].mxu0
    %697 = vmatprep.mubr.f32.mxu0 %v564
    %698 = vmatmul.mubr.f32.gmra.mrb[0].mxu0 %v495
    %v699 = vpop.f32.mrb[0].mxu0
    %v700 = vadd.f32 0.0, %v699
    %v701 = vpop.f32.mrb[0].mxu0
    %702 = vmatprep.mubr.f32.mxu0 %v567
    %703 = vmatmul.mubr.f32.gmra.mrb[0].mxu0 %v497
    %v704 = vpop.f32.mrb[0].mxu0
    %v705 = vadd.f32 0.0, %v704
    %v706 = vpop.f32.mrb[0].mxu0
    %707 = vmatprep.mubr.f32.mxu0 %v570
    %708 = vmatmul.mubr.f32.gmra.mrb[0].mxu0 %v499
    %v709 = vpop.f32.mrb[0].mxu0
    %v710 = vadd.f32 0.0, %v709
    %v711 = vpop.f32.mrb[0].mxu0
    %712 = vmatprep.mubr.f32.mxu0 %v573
    %713 = vmatmul.mubr.f32.gmra.mrb[0].mxu0 %v501
    %v714 = vpop.f32.mrb[0].mxu0
    %v715 = vadd.f32 0.0, %v714
    %v716 = vpop.f32.mrb[0].mxu0
    %717 = vmatprep.mubr.f32.mxu0 %v576
    %718 = vmatmul.mubr.f32.gmra.mrb[0].mxu0 %v503
    %v719 = vpop.f32.mrb[0].mxu0
    %v720 = vadd.f32 0.0, %v719
    %v721 = vpop.f32.mrb[0].mxu0
    %722 = vdwg.mxu0
    %v723 = vmax.f32 %v645, 0.0
    %v724 = vmax.f32 %v650, 0.0
    %v725 = vmax.f32 %v655, 0.0
    %v726 = vmax.f32 %v660, 0.0
    %v727 = vmax.f32 %v665, 0.0
    %v728 = vmax.f32 %v670, 0.0
    %v729 = vmax.f32 %v675, 0.0
    %v730 = vmax.f32 %v680, 0.0
    %v731 = vmax.f32 %v685, 0.0
    %v732 = vmax.f32 %v690, 0.0
    %v733 = vmax.f32 %v695, 0.0
    %v734 = vmax.f32 %v700, 0.0
    %v735 = vmax.f32 %v705, 0.0
    %v736 = vmax.f32 %v710, 0.0
    %v737 = vmax.f32 %v715, 0.0
    %v738 = vmax.f32 %v720, 0.0
    %v739 = vlaneseq
    %v740 = vshrl.u32 %v739, 7
    %v741 = vadd.s32 %v740, 8
    %v742 = vld [vmem:[%s2] sm:$0x1]
    %v743 = vlaneseq
    %v744 = vshrl.u32 %v743, 7
    %v745 = vsub.s32 0, %v744
    %v746 = vrot.slane %v742, %v745
    %vm747 = vcmp.lt.s32.totalorder %v740, %v746
    %vm748 = vcmp.lt.s32.totalorder %v741, %v746
    %v749 = vsel %vm747, %v723, -inf
    %v750 = vsel %vm748, %v724, -inf
    %v751 = vsel %vm747, %v725, -inf
    %v752 = vsel %vm748, %v726, -inf
    %v753 = vsel %vm747, %v727, -inf
    %v754 = vsel %vm748, %v728, -inf
    %v755 = vsel %vm747, %v729, -inf
    %v756 = vsel %vm748, %v730, -inf
    %v757 = vsel %vm747, %v731, -inf
    %v758 = vsel %vm748, %v732, -inf
    %v759 = vsel %vm747, %v733, -inf
    %v760 = vsel %vm748, %v734, -inf
    %v761 = vsel %vm747, %v735, -inf
    %v762 = vsel %vm748, %v736, -inf
    %v763 = vsel %vm747, %v737, -inf
    %v764 = vsel %vm748, %v738, -inf
    %v765 = vmax.f32 %v749, %v750
    %v766 = vrot.slane %v765, 4
    %v767 = vmax.f32 %v765, %v766
    %v768 = vrot.slane %v767, 2
    %v769 = vmax.f32 %v767, %v768
    %v770 = vrot.slane %v769, 1
    %v771 = vmax.f32 %v769, %v770
    %v772 = vmax.f32 %v751, %v752
    %v773 = vrot.slane %v772, 4
    %v774 = vmax.f32 %v772, %v773
    %v775 = vrot.slane %v774, 2
    %v776 = vmax.f32 %v774, %v775
    %v777 = vrot.slane %v776, 1
    %v778 = vmax.f32 %v776, %v777
    %v779 = vmax.f32 %v753, %v754
    %v780 = vrot.slane %v779, 4
    %v781 = vmax.f32 %v779, %v780
    %v782 = vrot.slane %v781, 2
    %v783 = vmax.f32 %v781, %v782
    %v784 = vrot.slane %v783, 1
    %v785 = vmax.f32 %v783, %v784
    %v786 = vmax.f32 %v755, %v756
    %v787 = vrot.slane %v786, 4
    %v788 = vmax.f32 %v786, %v787
    %v789 = vrot.slane %v788, 2
    %v790 = vmax.f32 %v788, %v789
    %v791 = vrot.slane %v790, 1
    %v792 = vmax.f32 %v790, %v791
    %v793 = vmax.f32 %v757, %v758
    %v794 = vrot.slane %v793, 4
    %v795 = vmax.f32 %v793, %v794
    %v796 = vrot.slane %v795, 2
    %v797 = vmax.f32 %v795, %v796
    %v798 = vrot.slane %v797, 1
    %v799 = vmax.f32 %v797, %v798
    %v800 = vmax.f32 %v759, %v760
    %v801 = vrot.slane %v800, 4
    %v802 = vmax.f32 %v800, %v801
    %v803 = vrot.slane %v802, 2
    %v804 = vmax.f32 %v802, %v803
    %v805 = vrot.slane %v804, 1
    %v806 = vmax.f32 %v804, %v805
    %v807 = vmax.f32 %v761, %v762
    %v808 = vrot.slane %v807, 4
    %v809 = vmax.f32 %v807, %v808
    %v810 = vrot.slane %v809, 2
    %v811 = vmax.f32 %v809, %v810
    %v812 = vrot.slane %v811, 1
    %v813 = vmax.f32 %v811, %v812
    %v814 = vmax.f32 %v763, %v764
    %v815 = vrot.slane %v814, 4
    %v816 = vmax.f32 %v814, %v815
    %v817 = vrot.slane %v816, 2
    %v818 = vmax.f32 %v816, %v817
    %v819 = vrot.slane %v818, 1
    %v820 = vmax.f32 %v818, %v819
    %vm829 = vcmask 1041409
    %v830 = vsel %vm829, %v778, %v771
    %vm831 = vcmask 1042434
    %v832 = vsel %vm831, %v785, %v830
    %vm833 = vcmask 1043459
    %v834 = vsel %vm833, %v792, %v832
    %vm835 = vcmask 1044484
    %v836 = vsel %vm835, %v799, %v834
    %vm837 = vcmask 1045509
    %v838 = vsel %vm837, %v806, %v836
    %vm839 = vcmask 1046534
    %v840 = vsel %vm839, %v813, %v838
    %vm841 = vcmask 1047559
    %v842 = vsel %vm841, %v820, %v840
    %844 = vst [vmem:[#allocation3] sm:$0xff] %v842
    %v845 = vsel %vm747, %v723, inf
    %v846 = vsel %vm748, %v724, inf
    %v847 = vsel %vm747, %v725, inf
    %v848 = vsel %vm748, %v726, inf
    %v849 = vsel %vm747, %v727, inf
    %v850 = vsel %vm748, %v728, inf
    %v851 = vsel %vm747, %v729, inf
    %v852 = vsel %vm748, %v730, inf
    %v853 = vsel %vm747, %v731, inf
    %v854 = vsel %vm748, %v732, inf
    %v855 = vsel %vm747, %v733, inf
    %v856 = vsel %vm748, %v734, inf
    %v857 = vsel %vm747, %v735, inf
    %v858 = vsel %vm748, %v736, inf
    %v859 = vsel %vm747, %v737, inf
    %v860 = vsel %vm748, %v738, inf
    %v861 = vmin.f32 %v845, %v846
    %v862 = vrot.slane %v861, 4
    %v863 = vmin.f32 %v861, %v862
    %v864 = vrot.slane %v863, 2
    %v865 = vmin.f32 %v863, %v864
    %v866 = vrot.slane %v865, 1
    %v867 = vmin.f32 %v865, %v866
    %v868 = vmin.f32 %v847, %v848
    %v869 = vrot.slane %v868, 4
    %v870 = vmin.f32 %v868, %v869
    %v871 = vrot.slane %v870, 2
    %v872 = vmin.f32 %v870, %v871
    %v873 = vrot.slane %v872, 1
    %v874 = vmin.f32 %v872, %v873
    %v875 = vmin.f32 %v849, %v850
    %v876 = vrot.slane %v875, 4
    %v877 = vmin.f32 %v875, %v876
    %v878 = vrot.slane %v877, 2
    %v879 = vmin.f32 %v877, %v878
    %v880 = vrot.slane %v879, 1
    %v881 = vmin.f32 %v879, %v880
    %v882 = vmin.f32 %v851, %v852
    %v883 = vrot.slane %v882, 4
    %v884 = vmin.f32 %v882, %v883
    %v885 = vrot.slane %v884, 2
    %v886 = vmin.f32 %v884, %v885
    %v887 = vrot.slane %v886, 1
    %v888 = vmin.f32 %v886, %v887
    %v889 = vmin.f32 %v853, %v854
    %v890 = vrot.slane %v889, 4
    %v891 = vmin.f32 %v889, %v890
    %v892 = vrot.slane %v891, 2
    %v893 = vmin.f32 %v891, %v892
    %v894 = vrot.slane %v893, 1
    %v895 = vmin.f32 %v893, %v894
    %v896 = vmin.f32 %v855, %v856
    %v897 = vrot.slane %v896, 4
    %v898 = vmin.f32 %v896, %v897
    %v899 = vrot.slane %v898, 2
    %v900 = vmin.f32 %v898, %v899
    %v901 = vrot.slane %v900, 1
    %v902 = vmin.f32 %v900, %v901
    %v903 = vmin.f32 %v857, %v858
    %v904 = vrot.slane %v903, 4
    %v905 = vmin.f32 %v903, %v904
    %v906 = vrot.slane %v905, 2
    %v907 = vmin.f32 %v905, %v906
    %v908 = vrot.slane %v907, 1
    %v909 = vmin.f32 %v907, %v908
    %v910 = vmin.f32 %v859, %v860
    %v911 = vrot.slane %v910, 4
    %v912 = vmin.f32 %v910, %v911
    %v913 = vrot.slane %v912, 2
    %v914 = vmin.f32 %v912, %v913
    %v915 = vrot.slane %v914, 1
    %v916 = vmin.f32 %v914, %v915
    %v925 = vsel %vm829, %v874, %v867
    %v926 = vsel %vm831, %v881, %v925
    %v927 = vsel %vm833, %v888, %v926
    %v928 = vsel %vm835, %v895, %v927
    %v929 = vsel %vm837, %v902, %v928
    %v930 = vsel %vm839, %v909, %v929
    %v931 = vsel %vm841, %v916, %v930
    %933 = vst [vmem:[#allocation5] sm:$0xff] %v931
    %v934 = vsel %vm747, %v723, 0.0
    %v935 = vsel %vm748, %v724, 0.0
    %v936 = vsel %vm747, %v725, 0.0
    %v937 = vsel %vm748, %v726, 0.0
    %v938 = vsel %vm747, %v727, 0.0
    %v939 = vsel %vm748, %v728, 0.0
    %v940 = vsel %vm747, %v729, 0.0
    %v941 = vsel %vm748, %v730, 0.0
    %v942 = vsel %vm747, %v731, 0.0
    %v943 = vsel %vm748, %v732, 0.0
    %v944 = vsel %vm747, %v733, 0.0
    %v945 = vsel %vm748, %v734, 0.0
    %v946 = vsel %vm747, %v735, 0.0
    %v947 = vsel %vm748, %v736, 0.0
    %v948 = vsel %vm747, %v737, 0.0
    %v949 = vsel %vm748, %v738, 0.0
    %v950 = vadd.f32 %v934, %v935
    %v951 = vrot.slane %v950, 4
    %v952 = vadd.f32 %v950, %v951
    %v953 = vrot.slane %v952, 2
    %v954 = vadd.f32 %v952, %v953
    %v955 = vrot.slane %v954, 1
    %v956 = vadd.f32 %v954, %v955
    %v957 = vadd.f32 %v936, %v937
    %v958 = vrot.slane %v957, 4
    %v959 = vadd.f32 %v957, %v958
    %v960 = vrot.slane %v959, 2
    %v961 = vadd.f32 %v959, %v960
    %v962 = vrot.slane %v961, 1
    %v963 = vadd.f32 %v961, %v962
    %v964 = vadd.f32 %v938, %v939
    %v965 = vrot.slane %v964, 4
    %v966 = vadd.f32 %v964, %v965
    %v967 = vrot.slane %v966, 2
    %v968 = vadd.f32 %v966, %v967
    %v969 = vrot.slane %v968, 1
    %v970 = vadd.f32 %v968, %v969
    %v971 = vadd.f32 %v940, %v941
    %v972 = vrot.slane %v971, 4
    %v973 = vadd.f32 %v971, %v972
    %v974 = vrot.slane %v973, 2
    %v975 = vadd.f32 %v973, %v974
    %v976 = vrot.slane %v975, 1
    %v977 = vadd.f32 %v975, %v976
    %v978 = vadd.f32 %v942, %v943
    %v979 = vrot.slane %v978, 4
    %v980 = vadd.f32 %v978, %v979
    %v981 = vrot.slane %v980, 2
    %v982 = vadd.f32 %v980, %v981
    %v983 = vrot.slane %v982, 1
    %v984 = vadd.f32 %v982, %v983
    %v985 = vadd.f32 %v944, %v945
    %v986 = vrot.slane %v985, 4
    %v987 = vadd.f32 %v985, %v986
    %v988 = vrot.slane %v987, 2
    %v989 = vadd.f32 %v987, %v988
    %v990 = vrot.slane %v989, 1
    %v991 = vadd.f32 %v989, %v990
    %v992 = vadd.f32 %v946, %v947
    %v993 = vrot.slane %v992, 4
    %v994 = vadd.f32 %v992, %v993
    %v995 = vrot.slane %v994, 2
    %v996 = vadd.f32 %v994, %v995
    %v997 = vrot.slane %v996, 1
    %v998 = vadd.f32 %v996, %v997
    %v999 = vadd.f32 %v948, %v949
    %v1000 = vrot.slane %v999, 4
    %v1001 = vadd.f32 %v999, %v1000
    %v1002 = vrot.slane %v1001, 2
    %v1003 = vadd.f32 %v1001, %v1002
    %v1004 = vrot.slane %v1003, 1
    %v1005 = vadd.f32 %v1003, %v1004
    %v1014 = vsel %vm829, %v963, %v956
    %v1015 = vsel %vm831, %v970, %v1014
    %v1016 = vsel %vm833, %v977, %v1015
    %v1017 = vsel %vm835, %v984, %v1016
    %v1018 = vsel %vm837, %v991, %v1017
    %v1019 = vsel %vm839, %v998, %v1018
    %v1020 = vsel %vm841, %v1005, %v1019
    %1022 = vst [vmem:[#allocation7] sm:$0xff] %v1020
    %v1023 = vmul.f32 %v934, %v723
    %v1024 = vmul.f32 %v935, %v724
    %v1025 = vmul.f32 %v936, %v725
    %v1026 = vmul.f32 %v937, %v726
    %v1027 = vmul.f32 %v938, %v727
    %v1028 = vmul.f32 %v939, %v728
    %v1029 = vmul.f32 %v940, %v729
    %v1030 = vmul.f32 %v941, %v730
    %v1031 = vmul.f32 %v942, %v731
    %v1032 = vmul.f32 %v943, %v732
    %v1033 = vmul.f32 %v944, %v733
    %v1034 = vmul.f32 %v945, %v734
    %v1035 = vmul.f32 %v946, %v735
    %v1036 = vmul.f32 %v947, %v736
    %v1037 = vmul.f32 %v948, %v737
    %v1038 = vmul.f32 %v949, %v738
    %v1039 = vadd.f32 %v1023, %v1024
    %v1040 = vrot.slane %v1039, 4
    %v1041 = vadd.f32 %v1039, %v1040
    %v1042 = vrot.slane %v1041, 2
    %v1043 = vadd.f32 %v1041, %v1042
    %v1044 = vrot.slane %v1043, 1
    %v1045 = vadd.f32 %v1043, %v1044
    %v1046 = vadd.f32 %v1025, %v1026
    %v1047 = vrot.slane %v1046, 4
    %v1048 = vadd.f32 %v1046, %v1047
    %v1049 = vrot.slane %v1048, 2
    %v1050 = vadd.f32 %v1048, %v1049
    %v1051 = vrot.slane %v1050, 1
    %v1052 = vadd.f32 %v1050, %v1051
    %v1053 = vadd.f32 %v1027, %v1028
    %v1054 = vrot.slane %v1053, 4
    %v1055 = vadd.f32 %v1053, %v1054
    %v1056 = vrot.slane %v1055, 2
    %v1057 = vadd.f32 %v1055, %v1056
    %v1058 = vrot.slane %v1057, 1
    %v1059 = vadd.f32 %v1057, %v1058
    %v1060 = vadd.f32 %v1029, %v1030
    %v1061 = vrot.slane %v1060, 4
    %v1062 = vadd.f32 %v1060, %v1061
    %v1063 = vrot.slane %v1062, 2
    %v1064 = vadd.f32 %v1062, %v1063
    %v1065 = vrot.slane %v1064, 1
    %v1066 = vadd.f32 %v1064, %v1065
    %v1067 = vadd.f32 %v1031, %v1032
    %v1068 = vrot.slane %v1067, 4
    %v1069 = vadd.f32 %v1067, %v1068
    %v1070 = vrot.slane %v1069, 2
    %v1071 = vadd.f32 %v1069, %v1070
    %v1072 = vrot.slane %v1071, 1
    %v1073 = vadd.f32 %v1071, %v1072
    %v1074 = vadd.f32 %v1033, %v1034
    %v1075 = vrot.slane %v1074, 4
    %v1076 = vadd.f32 %v1074, %v1075
    %v1077 = vrot.slane %v1076, 2
    %v1078 = vadd.f32 %v1076, %v1077
    %v1079 = vrot.slane %v1078, 1
    %v1080 = vadd.f32 %v1078, %v1079
    %v1081 = vadd.f32 %v1035, %v1036
    %v1082 = vrot.slane %v1081, 4
    %v1083 = vadd.f32 %v1081, %v1082
    %v1084 = vrot.slane %v1083, 2
    %v1085 = vadd.f32 %v1083, %v1084
    %v1086 = vrot.slane %v1085, 1
    %v1087 = vadd.f32 %v1085, %v1086
    %v1088 = vadd.f32 %v1037, %v1038
    %v1089 = vrot.slane %v1088, 4
    %v1090 = vadd.f32 %v1088, %v1089
    %v1091 = vrot.slane %v1090, 2
    %v1092 = vadd.f32 %v1090, %v1091
    %v1093 = vrot.slane %v1092, 1
    %v1094 = vadd.f32 %v1092, %v1093
    %v1103 = vsel %vm829, %v1052, %v1045
    %v1104 = vsel %vm831, %v1059, %v1103
    %v1105 = vsel %vm833, %v1066, %v1104
    %v1106 = vsel %vm835, %v1073, %v1105
    %v1107 = vsel %vm837, %v1080, %v1106
    %v1108 = vsel %vm839, %v1087, %v1107
    %v1109 = vsel %vm841, %v1094, %v1108
    %1111 = vst [vmem:[#allocation8] sm:$0xff] %v1109
    // Predicated region
    $region14: #{tpu_custom_call.1} parent=1 // pred_check
      _
    $region15: #{tpu_custom_call.1} parent=1 // pred_check_branch
      %1113 = sbr.rel (0) target = $region17
    $region16: #{tpu_custom_call.1} parent=1 // pred_region
      %s1115 = ssub.s32 128, 128
      %1116 = vsyncadd [#allocation4], %s1115
      %s1118 = sshll.u32 [#allocation3], 4
      %s1119 = int_to_ptr.vmem [resolvable:$true] %s1118
      %1121 = dma.vmem_to_hbm [thread:$0]  %s1119, 128, %s3, [#allocation4]
    $region17: #{tpu_custom_call.1} parent=1 // pred_fallthru
      _
    // Predicated region
    $region18: #{tpu_custom_call.1} parent=1 // pred_check
      _
    $region19: #{tpu_custom_call.1} parent=1 // pred_check_branch
      %1123 = sbr.rel (0) target = $region21
    $region20: #{tpu_custom_call.1} parent=1 // pred_region
      %s1125 = ssub.s32 128, 128
      %1126 = vsyncadd [#allocation6], %s1125
      %s1128 = sshll.u32 [#allocation5], 4
      %s1129 = int_to_ptr.vmem [resolvable:$true] %s1128
      %1131 = dma.vmem_to_hbm [thread:$0]  %s1129, 128, %s4, [#allocation6]
    $region21: #{tpu_custom_call.1} parent=1 // pred_fallthru
      _
    // Predicated region
    $region22: #{tpu_custom_call.1} parent=1 // pred_check
      _
    $region23: #{tpu_custom_call.1} parent=1 // pred_check_branch
      %1133 = sbr.rel (0) target = $region25
    $region24: #{tpu_custom_call.1} parent=1 // pred_region
      %s1135 = ssub.s32 128, 128
      %1136 = vsyncadd [#allocation6], %s1135
      %s1138 = sshll.u32 [#allocation7], 4
      %s1139 = int_to_ptr.vmem [resolvable:$true] %s1138
      %1141 = dma.vmem_to_hbm [thread:$0]  %s1139, 128, %s5, [#allocation6]
    $region25: #{tpu_custom_call.1} parent=1 // pred_fallthru
      _
    // Predicated region
    $region26: #{tpu_custom_call.1} parent=1 // pred_check
      _
    $region27: #{tpu_custom_call.1} parent=1 // pred_check_branch
      %1143 = sbr.rel (0) target = $region29
    $region28: #{tpu_custom_call.1} parent=1 // pred_region
      %s1145 = ssub.s32 128, 128
      %1146 = vsyncadd [#allocation9], %s1145
      %s1148 = sshll.u32 [#allocation8], 4
      %s1149 = int_to_ptr.vmem [resolvable:$true] %s1148
      %1151 = dma.vmem_to_hbm [thread:$0]  %s1149, 128, %s6, [#allocation9]
    $region29: #{tpu_custom_call.1} parent=1 // pred_fallthru
      _
    // Predicated region
    $region30: #{tpu_custom_call.1} parent=1 // pred_check
      _
    $region31: #{tpu_custom_call.1} parent=1 // pred_check_branch
      %1153 = sbr.rel (0) target = $region33
    $region32: #{tpu_custom_call.1} parent=1 // pred_region
      %1154 = dma.done [#allocation4], 128
    $region33: #{tpu_custom_call.1} parent=1 // pred_fallthru
      _
    // Predicated region
    $region34: #{tpu_custom_call.1} parent=1 // pred_check
      _
    $region35: #{tpu_custom_call.1} parent=1 // pred_check_branch
      %1156 = sbr.rel (0) target = $region37
    $region36: #{tpu_custom_call.1} parent=1 // pred_region
      %1157 = dma.done [#allocation6], 128
    $region37: #{tpu_custom_call.1} parent=1 // pred_fallthru
      _
    // Predicated region
    $region38: #{tpu_custom_call.1} parent=1 // pred_check
      _
    $region39: #{tpu_custom_call.1} parent=1 // pred_check_branch
      %1159 = sbr.rel (0) target = $region41
    $region40: #{tpu_custom_call.1} parent=1 // pred_region
      %1160 = dma.done [#allocation6], 128
    $region41: #{tpu_custom_call.1} parent=1 // pred_fallthru
      _
    // Predicated region
    $region42: #{tpu_custom_call.1} parent=1 // pred_check
      _
    $region43: #{tpu_custom_call.1} parent=1 // pred_check_branch
      %1162 = sbr.rel (0) target = $region45
    $region44: #{tpu_custom_call.1} parent=1 // pred_region
      %1163 = dma.done [#allocation9], 128
    $region45: #{tpu_custom_call.1} parent=1 // pred_fallthru
      _
    %1164 = vsyncpa [#allocation4], 1
    %1165 = vsyncpa [#allocation6], 1
    %1166 = vsyncpa [#allocation9], 1

</llo_original>
